<compile_context>
chip_gen: v7x
topology: tpu7x:2x2x1
jax: 0.10.0
libtpu: 0.0.40
codegen_flags: <defaults>
</compile_context>

<pallas_src>
import functools

import jax
import jax.numpy as jnp
from jax.experimental import pallas as pl
from jax.experimental.pallas import tpu as pltpu

_LANES = 128
_MIN_ELEMS = 8 * _LANES          # one f32 (8, 128) vreg worth of elements
_BLOCK_ROWS = 4096               # (4096, 128) f32 = 2 MiB per input per step
_ACC_ROWS = 512                  # accumulator height when it divides the block
_NCORES = 2                      # leading "parallel" axis (v7x: 2 TensorCores)


def _iou_partial_kernel(x_ref, t_ref, acc_ref, *,
                        block_rows, acc_rows, fold, total_rows, steps_per_core):
    """Per-core partial sums of (x*t) and (x+t).

    x_ref, t_ref : (block_rows, 128) VMEM tiles of the flattened batch-0 data.
    acc_ref      : (2, acc_rows, 128) per-core output block, kept resident
                   across the inner (reduction) grid axis and used as the
                   accumulator (pattern P3).
    """
    c = pl.program_id(0)   # core / partial index   (parallel)
    s = pl.program_id(1)   # step within this core  (arbitrary, sequential)

    @pl.when(s == 0)
    def _init():
        acc_ref[...] = jnp.zeros_like(acc_ref)

    row_start = (c * steps_per_core + s) * block_rows
    fully_valid = row_start + block_rows <= total_rows

    def _accumulate(prod, tot):
        # Fold (block_rows, 128) -> (acc_rows, 128) with static, sublane-aligned
        # slices: pure VALU adds; no per-step cross-lane (XLU) reduction.
        p = prod[0:acc_rows]
        q = tot[0:acc_rows]
        for k in range(1, fold):
            p = p + prod[k * acc_rows:(k + 1) * acc_rows]
            q = q + tot[k * acc_rows:(k + 1) * acc_rows]
        acc_ref[0] += p
        acc_ref[1] += q

    @pl.when(fully_valid)
    def _bulk():
        x = x_ref[...].astype(jnp.float32)
        t = t_ref[...].astype(jnp.float32)
        _accumulate(x * t, x + t)

    @pl.when(jnp.logical_not(fully_valid))
    def _edge():
        # Partial last block, or a clamped duplicate block from the 2-way core
        # split: zero out rows that lie past the real data.
        x = x_ref[...].astype(jnp.float32)
        t = t_ref[...].astype(jnp.float32)
        rid = jax.lax.broadcasted_iota(jnp.int32, (block_rows, _LANES), 0) + row_start
        valid = rid < total_rows
        x = jnp.where(valid, x, 0.0)
        t = jnp.where(valid, t, 0.0)
        _accumulate(x * t, x + t)


def iou_loss(inputs, targets, smooth=1.0):
    """Pallas implementation of IoULoss.forward(inputs, targets, smooth)."""
    if inputs.shape != targets.shape:
        raise ValueError("inputs and targets must have the same shape")
    batch = int(inputs.shape[0])
    n = 1
    for d in inputs.shape[1:]:
        n *= int(d)

    if n % _MIN_ELEMS == 0:
        # Free reshape of the original buffers; the BlockSpec addresses only
        # batch element 0, so no copy and no padding of HBM data is needed.
        rows = n // _LANES
        x3 = inputs.reshape(batch, rows, _LANES)
        t3 = targets.reshape(batch, rows, _LANES)
    else:
        # Odd sizes: pad just the batch-0 slice to whole (8, 128) tiles
        # (zero padding contributes 0 to both sums, so results are exact).
        pad = (-n) % _MIN_ELEMS
        rows = (n + pad) // _LANES
        x3 = jnp.pad(inputs[0].reshape(-1), (0, pad)).reshape(1, rows, _LANES)
        t3 = jnp.pad(targets[0].reshape(-1), (0, pad)).reshape(1, rows, _LANES)

    # rows is a multiple of 8 by construction.
    block_rows = min(_BLOCK_ROWS, rows)
    if block_rows % _ACC_ROWS == 0:
        acc_rows, fold = _ACC_ROWS, block_rows // _ACC_ROWS
    else:
        acc_rows, fold = block_rows, 1

    num_blocks = (rows + block_rows - 1) // block_rows
    steps_per_core = (num_blocks + _NCORES - 1) // _NCORES
    grid = (_NCORES, steps_per_core)

    def data_index_map(c, s):
        # Clamp so the DMA never walks past the array; over-run (duplicate)
        # blocks are fully masked inside the kernel.
        blk = jnp.minimum(c * steps_per_core + s, num_blocks - 1)
        return (0, blk, 0)

    data_spec = pl.BlockSpec((None, block_rows, _LANES), data_index_map)
    acc_spec = pl.BlockSpec((None, 2, acc_rows, _LANES),
                            lambda c, s: (c, 0, 0, 0))

    kernel = functools.partial(
        _iou_partial_kernel,
        block_rows=block_rows,
        acc_rows=acc_rows,
        fold=fold,
        total_rows=rows,
        steps_per_core=steps_per_core,
    )

    partials = pl.pallas_call(
        kernel,
        out_shape=jax.ShapeDtypeStruct((_NCORES, 2, acc_rows, _LANES),
                                       jnp.float32),
        grid=grid,
        in_specs=[data_spec, data_spec],
        out_specs=acc_spec,
        compiler_params=pltpu.CompilerParams(
            dimension_semantics=("parallel", "arbitrary"),
            # Headroom for the worst-case (odd rows) accumulator; safe on all
            # generations (v7x default scoped limit is already 32 MiB).
            vmem_limit_bytes=32 * 1024 * 1024,
        ),
    )(x3, t3)

    # Tiny epilogue: reduce the (2, 2, acc_rows, 128) partial-sum slab and
    # apply the IoU formula (smooth stays a plain Python float here).
    intersection = jnp.sum(partials[:, 0])
    total = jnp.sum(partials[:, 1])
    union = total - intersection
    iou = (intersection + smooth) / (union + smooth)
    return 1.0 - iou


def iou_loss_ref(inputs, targets, smooth=1.0):
    """Pure-JAX reference (mirrors the PyTorch forward)."""
    x = inputs[0].reshape(-1).astype(jnp.float32)
    t = targets[0].reshape(-1).astype(jnp.float32)
    intersection = jnp.sum(x * t)
    total = jnp.sum(x + t)
    union = total - intersection
    iou = (intersection + smooth) / (union + smooth)
    return 1.0 - iou


if __name__ == "__main__":
    key = jax.random.PRNGKey(0)
    k1, k2 = jax.random.split(key)

    # Small NCHW shapes consistent with a segmentation-style usage.
    B, C, H, W = 2, 4, 16, 16
    inputs = jax.nn.sigmoid(jax.random.normal(k1, (B, C, H, W), jnp.float32))
    targets = (jax.random.uniform(k2, (B, C, H, W)) > 0.5).astype(jnp.float32)

    loss = jax.block_until_ready(iou_loss(inputs, targets, smooth=1.0))
    ref = jax.block_until_ready(iou_loss_ref(inputs, targets, smooth=1.0))

    assert jnp.allclose(loss, ref, rtol=1e-5, atol=1e-5), (loss, ref)
    print("KERNEL_OK")
</pallas_src>

<mosaic_0001>
module attributes {stable_mosaic.version = 11 : i64} {
  func.func @_iou_partial_kernel(%arg0: i32, %arg1: i32, %arg2: memref<1x8x128xf32, #tpu.memory_space<vmem>>, %arg3: memref<1x8x128xf32, #tpu.memory_space<vmem>>, %arg4: memref<1x2x8x128xf32, #tpu.memory_space<vmem>>) attributes {dimension_semantics = [#tpu.dimension_semantics<parallel>, #tpu.dimension_semantics<arbitrary>], iteration_bounds = array<i64: 2, 1>, scalar_prefetch = 0 : i64, scratch_operands = 0 : i64, tpu.core_type = #tpu.core_type<tc>, window_params = [{transform_indices = @transform_0, window_bounds = array<i64: 1, 8, 128>}, {transform_indices = @transform_1, window_bounds = array<i64: 1, 8, 128>}, {transform_indices = @transform_2, window_bounds = array<i64: 1, 2, 8, 128>}]} {
    %c0_i32 = arith.constant 0 : i32
    %0 = arith.cmpi eq, %arg1, %c0_i32 : i32
    %1 = arith.extui %0 : i1 to i32
    %c0_i32_0 = arith.constant 0 : i32
    %2 = arith.cmpi ne, %1, %c0_i32_0 : i32
    scf.if %2 {
      %cst = arith.constant 0.000000e+00 : f32
      %13 = vector.broadcast %cst : f32 to vector<2x8x128xf32>
      %c0 = arith.constant 0 : index
      %c0_5 = arith.constant 0 : index
      %c0_6 = arith.constant 0 : index
      %c0_7 = arith.constant 0 : index
      %14 = vector.load %arg4[%c0, %c0_5, %c0_6, %c0_7] : memref<1x2x8x128xf32, #tpu.memory_space<vmem>>, vector<1x2x8x128xf32>
      %15 = vector.shape_cast %14 : vector<1x2x8x128xf32> to vector<2x8x128xf32>
      %16 = vector.shape_cast %13 : vector<2x8x128xf32> to vector<1x2x8x128xf32>
      tpu.vector_store %arg4[%c0, %c0_5, %c0_6, %c0_7], %16 {strides = array<i32>} : memref<1x2x8x128xf32, #tpu.memory_space<vmem>>, vector<1x2x8x128xf32>,
    } else {
    }
    %c1_i32 = arith.constant 1 : i32
    %3 = arith.muli %arg0, %c1_i32 : i32
    %4 = arith.addi %3, %arg1 : i32
    %c8_i32 = arith.constant 8 : i32
    %5 = arith.muli %4, %c8_i32 : i32
    %c8_i32_1 = arith.constant 8 : i32
    %6 = arith.addi %5, %c8_i32_1 : i32
    %c8_i32_2 = arith.constant 8 : i32
    %7 = arith.cmpi sle, %6, %c8_i32_2 : i32
    %8 = arith.extui %7 : i1 to i32
    %c0_i32_3 = arith.constant 0 : i32
    %9 = arith.cmpi ne, %8, %c0_i32_3 : i32
    scf.if %9 {
      %c0 = arith.constant 0 : index
      %c0_5 = arith.constant 0 : index
      %c0_6 = arith.constant 0 : index
      %13 = vector.load %arg2[%c0, %c0_5, %c0_6] : memref<1x8x128xf32, #tpu.memory_space<vmem>>, vector<1x8x128xf32>
      %14 = vector.shape_cast %13 : vector<1x8x128xf32> to vector<8x128xf32>
      %c0_7 = arith.constant 0 : index
      %c0_8 = arith.constant 0 : index
      %c0_9 = arith.constant 0 : index
      %15 = vector.load %arg3[%c0_7, %c0_8, %c0_9] : memref<1x8x128xf32, #tpu.memory_space<vmem>>, vector<1x8x128xf32>
      %16 = vector.shape_cast %15 : vector<1x8x128xf32> to vector<8x128xf32>
      %17 = arith.mulf %14, %16 : vector<8x128xf32>
      %18 = arith.addf %14, %16 : vector<8x128xf32>
      %c0_10 = arith.constant 0 : index
      %c0_11 = arith.constant 0 : index
      %c0_12 = arith.constant 0 : index
      %c0_13 = arith.constant 0 : index
      %19 = vector.load %arg4[%c0_10, %c0_11, %c0_12, %c0_13] : memref<1x2x8x128xf32, #tpu.memory_space<vmem>>, vector<1x1x8x128xf32>
      %20 = vector.shape_cast %19 : vector<1x1x8x128xf32> to vector<8x128xf32>
      %21 = arith.addf %20, %17 : vector<8x128xf32>
      %c0_14 = arith.constant 0 : index
      %c0_15 = arith.constant 0 : index
      %c0_16 = arith.constant 0 : index
      %c0_17 = arith.constant 0 : index
      %22 = vector.load %arg4[%c0_14, %c0_15, %c0_16, %c0_17] : memref<1x2x8x128xf32, #tpu.memory_space<vmem>>, vector<1x1x8x128xf32>
      %23 = vector.shape_cast %22 : vector<1x1x8x128xf32> to vector<8x128xf32>
      %24 = vector.shape_cast %21 : vector<8x128xf32> to vector<1x1x8x128xf32>
      tpu.vector_store %arg4[%c0_14, %c0_15, %c0_16, %c0_17], %24 {strides = array<i32>} : memref<1x2x8x128xf32, #tpu.memory_space<vmem>>, vector<1x1x8x128xf32>,
      %c0_18 = arith.constant 0 : index
      %c1 = arith.constant 1 : index
      %c0_19 = arith.constant 0 : index
      %c0_20 = arith.constant 0 : index
      %25 = vector.load %arg4[%c0_18, %c1, %c0_19, %c0_20] : memref<1x2x8x128xf32, #tpu.memory_space<vmem>>, vector<1x1x8x128xf32>
      %26 = vector.shape_cast %25 : vector<1x1x8x128xf32> to vector<8x128xf32>
      %27 = arith.addf %26, %18 : vector<8x128xf32>
      %c0_21 = arith.constant 0 : index
      %c1_22 = arith.constant 1 : index
      %c0_23 = arith.constant 0 : index
      %c0_24 = arith.constant 0 : index
      %28 = vector.load %arg4[%c0_21, %c1_22, %c0_23, %c0_24] : memref<1x2x8x128xf32, #tpu.memory_space<vmem>>, vector<1x1x8x128xf32>
      %29 = vector.shape_cast %28 : vector<1x1x8x128xf32> to vector<8x128xf32>
      %30 = vector.shape_cast %27 : vector<8x128xf32> to vector<1x1x8x128xf32>
      tpu.vector_store %arg4[%c0_21, %c1_22, %c0_23, %c0_24], %30 {strides = array<i32>} : memref<1x2x8x128xf32, #tpu.memory_space<vmem>>, vector<1x1x8x128xf32>,
    } else {
    }
    %true = arith.constant true
    %10 = arith.xori %7, %true : i1
    %11 = arith.extui %10 : i1 to i32
    %c0_i32_4 = arith.constant 0 : i32
    %12 = arith.cmpi ne, %11, %c0_i32_4 : i32
    scf.if %12 {
      %c0 = arith.constant 0 : index
      %c0_5 = arith.constant 0 : index
      %c0_6 = arith.constant 0 : index
      %13 = vector.load %arg2[%c0, %c0_5, %c0_6] : memref<1x8x128xf32, #tpu.memory_space<vmem>>, vector<1x8x128xf32>
      %14 = vector.shape_cast %13 : vector<1x8x128xf32> to vector<8x128xf32>
      %c0_7 = arith.constant 0 : index
      %c0_8 = arith.constant 0 : index
      %c0_9 = arith.constant 0 : index
      %15 = vector.load %arg3[%c0_7, %c0_8, %c0_9] : memref<1x8x128xf32, #tpu.memory_space<vmem>>, vector<1x8x128xf32>
      %16 = vector.shape_cast %15 : vector<1x8x128xf32> to vector<8x128xf32>
      %17 = tpu.iota {dimensions = array<i32: 0>} : vector<8x128xi32>
      %18 = vector.broadcast %5 : i32 to vector<8x128xi32>
      %19 = arith.addi %17, %18 : vector<8x128xi32>
      %c8_i32_10 = arith.constant 8 : i32
      %20 = vector.broadcast %c8_i32_10 : i32 to vector<8x128xi32>
      %21 = arith.cmpi slt, %19, %20 : vector<8x128xi32>
      %cst = arith.constant 0.000000e+00 : f32
      %22 = vector.broadcast %cst : f32 to vector<8x128xf32>
      %23 = arith.select %21, %14, %22 : vector<8x128xi1>, vector<8x128xf32>
      %cst_11 = arith.constant 0.000000e+00 : f32
      %24 = vector.broadcast %cst_11 : f32 to vector<8x128xf32>
      %25 = arith.select %21, %16, %24 : vector<8x128xi1>, vector<8x128xf32>
      %26 = arith.mulf %23, %25 : vector<8x128xf32>
      %27 = arith.addf %23, %25 : vector<8x128xf32>
      %c0_12 = arith.constant 0 : index
      %c0_13 = arith.constant 0 : index
      %c0_14 = arith.constant 0 : index
      %c0_15 = arith.constant 0 : index
      %28 = vector.load %arg4[%c0_12, %c0_13, %c0_14, %c0_15] : memref<1x2x8x128xf32, #tpu.memory_space<vmem>>, vector<1x1x8x128xf32>
      %29 = vector.shape_cast %28 : vector<1x1x8x128xf32> to vector<8x128xf32>
      %30 = arith.addf %29, %26 : vector<8x128xf32>
      %c0_16 = arith.constant 0 : index
      %c0_17 = arith.constant 0 : index
      %c0_18 = arith.constant 0 : index
      %c0_19 = arith.constant 0 : index
      %31 = vector.load %arg4[%c0_16, %c0_17, %c0_18, %c0_19] : memref<1x2x8x128xf32, #tpu.memory_space<vmem>>, vector<1x1x8x128xf32>
      %32 = vector.shape_cast %31 : vector<1x1x8x128xf32> to vector<8x128xf32>
      %33 = vector.shape_cast %30 : vector<8x128xf32> to vector<1x1x8x128xf32>
      tpu.vector_store %arg4[%c0_16, %c0_17, %c0_18, %c0_19], %33 {strides = array<i32>} : memref<1x2x8x128xf32, #tpu.memory_space<vmem>>, vector<1x1x8x128xf32>,
      %c0_20 = arith.constant 0 : index
      %c1 = arith.constant 1 : index
      %c0_21 = arith.constant 0 : index
      %c0_22 = arith.constant 0 : index
      %34 = vector.load %arg4[%c0_20, %c1, %c0_21, %c0_22] : memref<1x2x8x128xf32, #tpu.memory_space<vmem>>, vector<1x1x8x128xf32>
      %35 = vector.shape_cast %34 : vector<1x1x8x128xf32> to vector<8x128xf32>
      %36 = arith.addf %35, %27 : vector<8x128xf32>
      %c0_23 = arith.constant 0 : index
      %c1_24 = arith.constant 1 : index
      %c0_25 = arith.constant 0 : index
      %c0_26 = arith.constant 0 : index
      %37 = vector.load %arg4[%c0_23, %c1_24, %c0_25, %c0_26] : memref<1x2x8x128xf32, #tpu.memory_space<vmem>>, vector<1x1x8x128xf32>
      %38 = vector.shape_cast %37 : vector<1x1x8x128xf32> to vector<8x128xf32>
      %39 = vector.shape_cast %36 : vector<8x128xf32> to vector<1x1x8x128xf32>
      tpu.vector_store %arg4[%c0_23, %c1_24, %c0_25, %c0_26], %39 {strides = array<i32>} : memref<1x2x8x128xf32, #tpu.memory_space<vmem>>, vector<1x1x8x128xf32>,
    } else {
    }
    return
  }
  func.func @transform_0(%arg0: i32, %arg1: i32) -> (i32, i32, i32) {
    %c1_i32 = arith.constant 1 : i32
    %0 = arith.muli %arg0, %c1_i32 : i32
    %1 = arith.addi %0, %arg1 : i32
    %c0_i32 = arith.constant 0 : i32
    %2 = arith.minsi %1, %c0_i32 : i32
    %c0_i32_0 = arith.constant 0 : i32
    %c0_i32_1 = arith.constant 0 : i32
    %c0_i32_2 = arith.constant 0 : i32
    return %c0_i32_0, %2, %c0_i32_1 : i32, i32, i32
  }
  func.func @transform_1(%arg0: i32, %arg1: i32) -> (i32, i32, i32) {
    %c1_i32 = arith.constant 1 : i32
    %0 = arith.muli %arg0, %c1_i32 : i32
    %1 = arith.addi %0, %arg1 : i32
    %c0_i32 = arith.constant 0 : i32
    %2 = arith.minsi %1, %c0_i32 : i32
    %c0_i32_0 = arith.constant 0 : i32
    %c0_i32_1 = arith.constant 0 : i32
    %c0_i32_2 = arith.constant 0 : i32
    return %c0_i32_0, %2, %c0_i32_1 : i32, i32, i32
  }
  func.func @transform_2(%arg0: i32, %arg1: i32) -> (i32, i32, i32, i32) {
    %c0_i32 = arith.constant 0 : i32
    %c0_i32_0 = arith.constant 0 : i32
    %c0_i32_1 = arith.constant 0 : i32
    %c0_i32_2 = arith.constant 0 : i32
    return %arg0, %c0_i32, %c0_i32_0, %c0_i32_1 : i32, i32, i32, i32
  }
}

</mosaic_0001>

<llo_original>
// kernel: tpu_custom_call.1
$region0: #{tpu_custom_call.1}
  #allocation0 [shape = 'u32[]', space=smem, size = 0x4, offset = 0x4, fixed_abs, tag = 'smem constant byte address 0x4 - core index']
  #allocation1 [shape = 'u32[144,128]{1,0:T(1,128)}', space=vmem, size = 0x12000, scoped, tag = 'internal scratch']
  %s0 = inlined_call_operand.hbm [shape: f32[2,8,128], index: 0, kind: input, shape index: {}]
  %s1 = inlined_call_operand.hbm [shape: f32[2,8,128], index: 1, kind: input, shape index: {}]
  %s2 = inlined_call_operand.hbm [shape: f32[2,2,8,128], index: 2, kind: output, shape index: {}]
  %s3 = sld [smem:[#allocation0]]
  $region61: #{tpu_custom_call.1} parent=0
    _
  %s5 = ssub.s32 1, %s3
  %s6 = scalar_select 0, %s5, %s3
  $region1: #{tpu_custom_call.1} parent=0
    #allocation2 [shape = 'u8[8192]{0}', space=vmem, size = 0x2000, scoped, tag = 'input window, operand 0']
    #allocation3 [shape = 's32[2]{0}', space=sflag, size = 0x8, scoped, tag = 'scoped memory for tpu_custom_call.1']
    #allocation4 [shape = 's32[2]{0}', space=sflag, size = 0x8, scoped, tag = 'scoped memory for tpu_custom_call.1']
    #allocation5 [shape = 'u8[8192]{0}', space=vmem, size = 0x2000, scoped, tag = 'input window, operand 1']
    #allocation6 [shape = 's32[2]{0}', space=sflag, size = 0x8, scoped, tag = 'scoped memory for tpu_custom_call.1']
    #allocation7 [shape = 'u8[16384]{0}', space=vmem, size = 0x4000, scoped, tag = 'output window, operand 0']
    %7 = vsyncpa [#allocation3], 0
    %s8 = scalar_lea.sflag [#allocation3], 1
    %9 = vsyncpa %s8, 0
    %10 = vsyncpa [#allocation6], 0
    %s11 = scalar_lea.sflag [#allocation6], 1
    %12 = vsyncpa %s11, 0
    %13 = vsyncpa [#allocation4], 0
    %s14 = scalar_lea.sflag [#allocation4], 1
    %15 = vsyncpa %s14, 0
    loop: start=0, step=1, limit=4
    $region2: #{tpu_custom_call.1} parent=1 // loop_pre_header
      _
    $region3: #{tpu_custom_call.1} parent=1 // loop_header
      %s17 = sphi 0, %s21
      %p18 = scmp.ge.s32.totalorder %s17, 4
      %s24 = sphi 0, %s36
      %s25 = sphi 0, %s32
      %s26 = sphi 0, %s24
      %s27 = sphi 0, %s25
      %s28 = sphi 0, %s26
      %s29 = sphi 0, %s27
      %s45 = sphi 0, %s47
      %s48 = sphi 0, %s45
      %s49 = sphi 0, %s48
      %s65 = sphi 0, %s49
      %s77 = sphi 0, %s79
      %s80 = sphi 0, %s77
      %s81 = sphi 0, %s80
      %s97 = sphi 0, %s81
      %s103 = sphi 0, %s105
      %s106 = sphi 0, %s103
      %s107 = sphi 0, %s106
      %s123 = sphi 0, %s107
    $region4: #{tpu_custom_call.1} parent=1 // loop_header_branch
      %20 = sbr.rel (%p18) target = $region8
    $region5: #{tpu_custom_call.1} parent=1 // loop_body
      %s22 = ssub.s32 %s17, 1
      %s23 = ssub.s32 %s17, 2
      %s30 = sadd.s32 1, %s25
      %p31 = scmp.ge.s32.totalorder %s30, 1
      %s32 = scalar_select %p31, 0, %s30
      %s33 = sadd.s32 1, %s24
      %s34 = scalar_select %p31, %s33, %s24
      %p35 = scmp.ge.s32.totalorder %s34, 2
      %s36 = scalar_select %p35, 0, %s34
      %s37 = sadd.s32 %s24, %s25
      %p38 = scmp.lt.s32.totalorder %s37, 0
      %s39 = scalar_select %p38, %s37, 0
      %s40 = sadd.s32 %s36, %s32
      %p41 = scmp.lt.s32.totalorder %s40, 0
      %s42 = scalar_select %p41, %s40, 0
      %s43 = ssub.s32 %s39, %s42
      %p44 = scmp.eq.s32.totalorder %s43, 0
      %s46 = sadd.s32 %s45, 1
      %s47 = scalar_select %p44, %s45, %s46
      %p50 = pneg %p44
      %p51 = scmp.eq.s32.totalorder %s17, 1
      %p52 = por %p50, %p51
      %p53 = scmp.ne.s32.totalorder %s45, %s48
      %p54 = scmp.eq.s32.totalorder %s17, 0
      %p55 = por %p53, %p54
      %p56 = scmp.ne.s32.totalorder %s45, %s48
      %p57 = scmp.eq.s32.totalorder %s22, 1
      %p58 = por %p56, %p57
      %p59 = scmp.ne.s32.totalorder %s48, %s49
      %p60 = scmp.eq.s32.totalorder %s22, 0
      %p61 = por %p59, %p60
      %p62 = scmp.ne.s32.totalorder %s48, %s49
      %p63 = scmp.eq.s32.totalorder %s23, 1
      %p64 = por %p62, %p63
      %p66 = scmp.ne.s32.totalorder %s49, %s65
      %p67 = scmp.eq.s32.totalorder %s23, 0
      %p68 = por %p66, %p67
      %s69 = sadd.s32 %s24, %s25
      %p70 = scmp.lt.s32.totalorder %s69, 0
      %s71 = scalar_select %p70, %s69, 0
      %s72 = sadd.s32 %s36, %s32
      %p73 = scmp.lt.s32.totalorder %s72, 0
      %s74 = scalar_select %p73, %s72, 0
      %s75 = ssub.s32 %s71, %s74
      %p76 = scmp.eq.s32.totalorder %s75, 0
      %s78 = sadd.s32 %s77, 1
      %s79 = scalar_select %p76, %s77, %s78
      %p82 = pneg %p76
      %p83 = scmp.eq.s32.totalorder %s17, 1
      %p84 = por %p82, %p83
      %p85 = scmp.ne.s32.totalorder %s77, %s80
      %p86 = scmp.eq.s32.totalorder %s17, 0
      %p87 = por %p85, %p86
      %p88 = scmp.ne.s32.totalorder %s77, %s80
      %p89 = scmp.eq.s32.totalorder %s22, 1
      %p90 = por %p88, %p89
      %p91 = scmp.ne.s32.totalorder %s80, %s81
      %p92 = scmp.eq.s32.totalorder %s22, 0
      %p93 = por %p91, %p92
      %p94 = scmp.ne.s32.totalorder %s80, %s81
      %p95 = scmp.eq.s32.totalorder %s23, 1
      %p96 = por %p94, %p95
      %p98 = scmp.ne.s32.totalorder %s81, %s97
      %p99 = scmp.eq.s32.totalorder %s23, 0
      %p100 = por %p98, %p99
      %s101 = ssub.s32 %s24, %s36
      %p102 = scmp.eq.s32.totalorder %s101, 0
      %s104 = sadd.s32 %s103, 1
      %s105 = scalar_select %p102, %s103, %s104
      %p108 = pneg %p102
      %p109 = scmp.eq.s32.totalorder %s17, 1
      %p110 = por %p108, %p109
      %p111 = scmp.ne.s32.totalorder %s103, %s106
      %p112 = scmp.eq.s32.totalorder %s17, 0
      %p113 = por %p111, %p112
      %p114 = scmp.ne.s32.totalorder %s103, %s106
      %p115 = scmp.eq.s32.totalorder %s22, 1
      %p116 = por %p114, %p115
      %p117 = scmp.ne.s32.totalorder %s106, %s107
      %p118 = scmp.eq.s32.totalorder %s22, 0
      %p119 = por %p117, %p118
      %p120 = scmp.ne.s32.totalorder %s106, %s107
      %p121 = scmp.eq.s32.totalorder %s23, 1
      %p122 = por %p120, %p121
      %p124 = scmp.ne.s32.totalorder %s107, %s123
      %p125 = scmp.eq.s32.totalorder %s23, 0
      %p126 = por %p124, %p125
      %p127 = scmp.le.s32.totalorder 1, %s17
      %p128 = scmp.lt.s32.totalorder %s17, 3
      %p129 = pnand %p127, %p128
      %p130 = pneg %p129
      // Predicated region
      $region9: #{tpu_custom_call.1} parent=5 // pred_check
        _
      $region10: #{tpu_custom_call.1} parent=5 // pred_check_branch
        %132 = sbr.rel (%p129) target = $region12
      $region11: #{tpu_custom_call.1} parent=5 // pred_region
        %s133 = ssub.s32 %s17, 1
      $region12: #{tpu_custom_call.1} parent=5 // pred_fallthru
        _
      %p134 = scmp.lt.s32.totalorder %s17, 2
      // Predicated region
      $region13: #{tpu_custom_call.1} parent=5 // pred_check
        %p135 = pneg %p134
      $region14: #{tpu_custom_call.1} parent=5 // pred_check_branch
        %137 = sbr.rel (%p135) target = $region16
      $region15: #{tpu_custom_call.1} parent=5 // pred_region
        // Predicated region
        $region17: #{tpu_custom_call.1} parent=15 // pred_check
          %p138 = pneg %p55
        $region18: #{tpu_custom_call.1} parent=15 // pred_check_branch
          %140 = sbr.rel (%p138) target = $region20
        $region19: #{tpu_custom_call.1} parent=15 // pred_region
          %s141 = sand.u32 %s45, 1
          %s142 = scalar_lea.sflag [#allocation3], %s141
          %s143 = sand.u32 %s45, 1
          %s144 = smul.addr %s143, 8
          %s145 = scalar_lea.vmem [#allocation2], %s144
          %s146 = sadd.s32 %s24, %s25
          %p147 = scmp.lt.s32.totalorder %s146, 0
          %s148 = scalar_select %p147, %s146, 0
          %s150 = ssub.s32 128, 128
          %151 = vsyncadd %s142, %s150
          %s152 = smul.addr %s148, 128
          %s153 = scalar_lea.hbm %s0, %s152
          %s155 = sshll.u32 %s145, 4
          %s156 = int_to_ptr.vmem [resolvable:$true] %s155
          %158 = dma.hbm_to_vmem [thread:$0]  %s153, 128, %s156, %s142
        $region20: #{tpu_custom_call.1} parent=15 // pred_fallthru
          _
        // Predicated region
        $region21: #{tpu_custom_call.1} parent=15 // pred_check
          %p159 = pneg %p87
        $region22: #{tpu_custom_call.1} parent=15 // pred_check_branch
          %161 = sbr.rel (%p159) target = $region24
        $region23: #{tpu_custom_call.1} parent=15 // pred_region
          %s162 = sand.u32 %s77, 1
          %s163 = scalar_lea.sflag [#allocation6], %s162
          %s164 = sand.u32 %s77, 1
          %s165 = smul.addr %s164, 8
          %s166 = scalar_lea.vmem [#allocation5], %s165
          %s167 = sadd.s32 %s24, %s25
          %p168 = scmp.lt.s32.totalorder %s167, 0
          %s169 = scalar_select %p168, %s167, 0
          %s171 = ssub.s32 128, 128
          %172 = vsyncadd %s163, %s171
          %s173 = smul.addr %s169, 128
          %s174 = scalar_lea.hbm %s1, %s173
          %s176 = sshll.u32 %s166, 4
          %s177 = int_to_ptr.vmem [resolvable:$true] %s176
          %179 = dma.hbm_to_vmem [thread:$0]  %s174, 128, %s177, %s163
        $region24: #{tpu_custom_call.1} parent=15 // pred_fallthru
          _
      $region16: #{tpu_custom_call.1} parent=5 // pred_fallthru
        _
      %p180 = scmp.le.s32.totalorder 1, %s17
      %p181 = scmp.lt.s32.totalorder %s17, 3
      %p182 = pnand %p180, %p181
      %p183 = pneg %p182
      // Predicated region
      $region25: #{tpu_custom_call.1} parent=5 // pred_check
        _
      $region26: #{tpu_custom_call.1} parent=5 // pred_check_branch
        %185 = sbr.rel (%p182) target = $region28
      $region27: #{tpu_custom_call.1} parent=5 // pred_region
        %s186 = ssub.s32 %s17, 1
        %s187 = sand.u32 %s48, 1
        %s188 = scalar_lea.sflag [#allocation3], %s187
        %s189 = sand.u32 %s48, 1
        %s190 = smul.addr %s189, 8
        %s191 = scalar_lea.vmem [#allocation2], %s190
        // Predicated region
        $region29: #{tpu_custom_call.1} parent=27 // pred_check
          %p192 = pneg %p61
        $region30: #{tpu_custom_call.1} parent=27 // pred_check_branch
          %194 = sbr.rel (%p192) target = $region32
        $region31: #{tpu_custom_call.1} parent=27 // pred_region
          %195 = dma.done %s188, 128
        $region32: #{tpu_custom_call.1} parent=27 // pred_fallthru
          _
        %s196 = sand.u32 %s80, 1
        %s197 = scalar_lea.sflag [#allocation6], %s196
        %s198 = sand.u32 %s80, 1
        %s199 = smul.addr %s198, 8
        %s200 = scalar_lea.vmem [#allocation5], %s199
        // Predicated region
        $region33: #{tpu_custom_call.1} parent=27 // pred_check
          %p201 = pneg %p93
        $region34: #{tpu_custom_call.1} parent=27 // pred_check_branch
          %203 = sbr.rel (%p201) target = $region36
        $region35: #{tpu_custom_call.1} parent=27 // pred_region
          %204 = dma.done %s197, 128
        $region36: #{tpu_custom_call.1} parent=27 // pred_fallthru
          _
        %s205 = sand.u32 %s48, 1
        %s206 = scalar_lea.sflag [#allocation3], %s205
        %s207 = sand.u32 %s48, 1
        %s208 = smul.addr %s207, 8
        %s209 = scalar_lea.vmem [#allocation2], %s208
        %p210 = pneg %p61
        %p211 = pneg %p58
        %s212 = sand.u32 %s80, 1
        %s213 = scalar_lea.sflag [#allocation6], %s212
        %s214 = sand.u32 %s80, 1
        %s215 = smul.addr %s214, 8
        %s216 = scalar_lea.vmem [#allocation5], %s215
        %p217 = pneg %p93
        %p218 = pneg %p90
        %p219 = pneg %p119
        %p220 = pneg %p116
        %s221 = sand.u32 %s106, 1
        %s222 = scalar_lea.sflag [#allocation4], %s221
        %s223 = sand.u32 %s106, 1
        %s224 = smul.addr %s223, 16
        %s225 = scalar_lea.vmem [#allocation7], %s224
        %s226 = sadd.s32 %s26, %s27
        %p227 = scmp.lt.s32.totalorder %s226, 0
        %s228 = scalar_select %p227, %s226, 0
        %s229 = sadd.s32 %s26, %s27
        %p230 = scmp.lt.s32.totalorder %s229, 0
        %s231 = scalar_select %p230, %s229, 0
        %p232 = scmp.eq.s32.totalorder %s27, 0
        // Predicated region
        $region37: #{tpu_custom_call.1} parent=27 // pred_check
          %p233 = pneg %p232
        $region38: #{tpu_custom_call.1} parent=27 // pred_check_branch
          %235 = sbr.rel (%p233) target = $region40
        $region39: #{tpu_custom_call.1} parent=27 // pred_region
          %236 = vst [vmem:[%s225] sm:$0xff] 0.0
          %237 = vst [vmem:[%s225 + $0x8] sm:$0xff] 0.0
        $region40: #{tpu_custom_call.1} parent=27 // pred_fallthru
          _
        %s238 = sadd.s32 %s26, %s27
        %s239 = smul.u32 %s238, 8
        %s240 = sadd.s32 %s239, 8
        %p241 = scmp.le.s32.totalorder %s240, 8
        // Predicated region
        $region41: #{tpu_custom_call.1} parent=27 // pred_check
          %p242 = pneg %p241
        $region42: #{tpu_custom_call.1} parent=27 // pred_check_branch
          %244 = sbr.rel (%p242) target = $region44
        $region43: #{tpu_custom_call.1} parent=27 // pred_region
          %v245 = vld [vmem:[%s191] sm:$0xff]
          %v246 = vld [vmem:[%s200] sm:$0xff]
          %v247 = vmul.f32 %v245, %v246
          %v248 = vadd.f32 %v245, %v246
          %v249 = vld [vmem:[%s225] sm:$0xff]
          %v250 = vadd.f32 %v249, %v247
          %251 = vst [vmem:[%s225] sm:$0xff] %v250
          %s252 = scalar_lea.vmem %s225, 8 [#allocation7]
          %v253 = vld [vmem:[%s252] sm:$0xff]
          %v254 = vadd.f32 %v253, %v248
          %255 = vst [vmem:[%s252] sm:$0xff] %v254
        $region44: #{tpu_custom_call.1} parent=27 // pred_fallthru
          _
        %p256 = scmp.gt.s32.totalorder %s240, 8
        // Predicated region
        $region45: #{tpu_custom_call.1} parent=27 // pred_check
          %p257 = pneg %p256
        $region46: #{tpu_custom_call.1} parent=27 // pred_check_branch
          %259 = sbr.rel (%p257) target = $region48
        $region47: #{tpu_custom_call.1} parent=27 // pred_region
          %v260 = vld [vmem:[%s191] sm:$0xff]
          %v261 = vld [vmem:[%s200] sm:$0xff]
          %v262 = vlaneseq
          %v263 = vshrl.u32 %v262, 7
          %v264 = vstv %s239
          %v265 = vadd.s32 %v263, %v264
          %vm266 = vcmp.lt.s32.totalorder %v265, 8
          %v267 = vsel %vm266, %v260, 0.0
          %v268 = vsel %vm266, %v261, 0.0
          %v269 = vmul.f32 %v267, %v268
          %v270 = vadd.f32 %v267, %v268
          %v271 = vld [vmem:[%s225] sm:$0xff]
          %v272 = vadd.f32 %v271, %v269
          %273 = vst [vmem:[%s225] sm:$0xff] %v272
          %s274 = scalar_lea.vmem %s225, 8 [#allocation7]
          %v275 = vld [vmem:[%s274] sm:$0xff]
          %v276 = vadd.f32 %v275, %v270
          %277 = vst [vmem:[%s274] sm:$0xff] %v276
        $region48: #{tpu_custom_call.1} parent=27 // pred_fallthru
          _
        %s278 = sand.u32 %s106, 1
        %s279 = scalar_lea.sflag [#allocation4], %s278
        %s280 = sand.u32 %s106, 1
        %s281 = smul.addr %s280, 16
        %s282 = scalar_lea.vmem [#allocation7], %s281
        // Predicated region
        $region49: #{tpu_custom_call.1} parent=27 // pred_check
          %p283 = pneg %p116
        $region50: #{tpu_custom_call.1} parent=27 // pred_check_branch
          %285 = sbr.rel (%p283) target = $region52
        $region51: #{tpu_custom_call.1} parent=27 // pred_region
          %s287 = ssub.s32 256, 256
          %288 = vsyncadd %s279, %s287
          %s289 = smul.addr %s26, 2
          %s290 = smul.addr %s289, 128
          %s291 = scalar_lea.hbm %s2, %s290
          %s292 = sshll.u32 %s282, 4
          %s293 = int_to_ptr.vmem [resolvable:$true] %s292
          %298 = dma.vmem_to_hbm [thread:$0]  %s293, 256, %s291, %s279, 128, 128, 8
        $region52: #{tpu_custom_call.1} parent=27 // pred_fallthru
          _
      $region28: #{tpu_custom_call.1} parent=5 // pred_fallthru
        _
      %p299 = scmp.le.s32.totalorder 2, %s17
      // Predicated region
      $region53: #{tpu_custom_call.1} parent=5 // pred_check
        %p300 = pneg %p299
      $region54: #{tpu_custom_call.1} parent=5 // pred_check_branch
        %302 = sbr.rel (%p300) target = $region56
      $region55: #{tpu_custom_call.1} parent=5 // pred_region
        %s303 = ssub.s32 %s17, 2
        // Predicated region
        $region57: #{tpu_custom_call.1} parent=55 // pred_check
          %p304 = pneg %p122
        $region58: #{tpu_custom_call.1} parent=55 // pred_check_branch
          %306 = sbr.rel (%p304) target = $region60
        $region59: #{tpu_custom_call.1} parent=55 // pred_region
          %s307 = sand.u32 %s107, 1
          %s308 = scalar_lea.sflag [#allocation4], %s307
          %s309 = sand.u32 %s107, 1
          %s310 = smul.addr %s309, 16
          %s311 = scalar_lea.vmem [#allocation7], %s310
          %312 = dma.done %s308, 256
        $region60: #{tpu_custom_call.1} parent=55 // pred_fallthru
          _
      $region56: #{tpu_custom_call.1} parent=5 // pred_fallthru
        _
    $region6: #{tpu_custom_call.1} parent=1 // loop_footer
      %s21 = sadd.s32 1, %s17
    $region7: #{tpu_custom_call.1} parent=1 // loop_footer_branch
      %16 = sbr.rel target = $region3
    $region8: #{tpu_custom_call.1} parent=1 // loop_exit
      _
    %313 = vsyncpa [#allocation3], 1
    %s314 = scalar_lea.sflag [#allocation3], 1
    %315 = vsyncpa %s314, 1
    %316 = vsyncpa [#allocation6], 1
    %s317 = scalar_lea.sflag [#allocation6], 1
    %318 = vsyncpa %s317, 1
    %319 = vsyncpa [#allocation4], 1
    %s320 = scalar_lea.sflag [#allocation4], 1
    %321 = vsyncpa %s320, 1

</llo_original>
